<compile_context>
chip_gen: v5e
topology: v5e:2x2
jax: 0.10.0
libtpu: 0.0.40
codegen_flags: <defaults>
</compile_context>

<pallas_src>
import functools
import math

import jax
import jax.numpy as jnp
from jax import lax
from jax.experimental import pallas as pl
from jax.experimental.pallas import tpu as pltpu


_CFG = {"single_buffer_weights": True}


def _resident_spec(shape, index_map):
    """Constant-index (VMEM-resident) weight spec; single-buffered (the second
    pipeline buffer is pure waste for constant-index inputs) when supported."""
    if _CFG["single_buffer_weights"]:
        try:
            return pl.BlockSpec(shape, index_map, pipeline_mode=pl.Buffered(1))
        except Exception:  # older jax without BlockSpec(pipeline_mode=...)
            _CFG["single_buffer_weights"] = False
    return pl.BlockSpec(shape, index_map)


def _vmem_limit(*byte_counts):
    est = sum(int(b) for b in byte_counts)
    return int(min(64 * 2 ** 20, max(16 * 2 ** 20, 2 * est)))


def _seq_tile(s, pref=256):
    """Largest tile <= pref that exactly divides s (and is sublane-friendly)."""
    if s <= pref:
        return s
    for t in range(pref, 0, -1):
        if s % t == 0 and t % 8 == 0:
            return t
    return s


# ----------------------------- Pallas kernels ------------------------------ #

def _kv_proj_kernel(x_ref, w_ref, b_ref, o_ref):
    """Row tile: fused K/V projection  rows @ [Wk^T | Wv^T] + [bk | bv]."""
    h = lax.dot_general(x_ref[...], w_ref[...],
                        dimension_numbers=(((1,), (0,)), ((), ())),
                        preferred_element_type=jnp.float32) + b_ref[...]
    o_ref[...] = h.astype(o_ref.dtype)


def _mha_flash_kernel(xq_ref, kv_ref, bias_ref, wq_ref, bq_ref, wo_ref, bo_ref,
                      g_ref, beta_ref, o_ref, q_s, m_s, l_s, acc_s, *,
                      num_heads, head_dim, eps, approx_recip):
    """Flash-style self-attention for one (batch, q-tile) pair, iterating the
    kv-tile grid axis (innermost, "arbitrary"). Q projection is fused at kv
    step 0 (scale pre-folded into Wq/bq); output projection + residual + LN1
    are fused at the last kv step."""
    cdt = xq_ref.dtype
    d_model = num_heads * head_dim
    ki = pl.program_id(2)

    @pl.when(ki == 0)
    def _init():
        q = lax.dot_general(xq_ref[0], wq_ref[...],
                            dimension_numbers=(((1,), (0,)), ((), ())),
                            preferred_element_type=jnp.float32) + bq_ref[...]
        q_s[...] = q.astype(cdt)                       # cast once, keep cdt copy
        m_s[...] = jnp.full_like(m_s, -jnp.inf)
        l_s[...] = jnp.zeros_like(l_s)
        acc_s[...] = jnp.zeros_like(acc_s)

    kv = kv_ref[0]                                     # (tkv, 2D), compute dtype
    tq = q_s.shape[0]
    tkv = kv.shape[0]
    # Additive mask bias, materialized once per kv step (not per head).
    bias = jnp.broadcast_to(bias_ref[0], (tq, tkv))    # (tq, tkv) fp32

    # TODO(synk): static unroll is fine for small num_heads; for num_heads >= 8
    # use a heads grid axis / fori_loop (and 128-padded head_dim) instead.
    for h in range(num_heads):
        lo = h * head_dim
        hi = lo + head_dim
        q_h = q_s[:, lo:hi]                            # (tq, hd)
        k_h = kv[:, lo:hi]                             # (tkv, hd)
        v_h = kv[:, d_model + lo:d_model + hi]         # (tkv, hd)

        # scores = q_h @ k_h^T (scale already folded into Wq) + mask bias
        s = lax.dot_general(q_h, k_h,
                            dimension_numbers=(((1,), (1,)), ((), ())),
                            preferred_element_type=jnp.float32) + bias

        m_prev = m_s[:, h:h + 1]                       # (tq, 1)
        m_new = jnp.maximum(m_prev, jnp.max(s, axis=-1, keepdims=True))
        alpha = jnp.exp(m_prev - m_new)
        p = jnp.exp(s - m_new)                         # (tq, tkv)
        l_s[:, h:h + 1] = alpha * l_s[:, h:h + 1] + jnp.sum(p, -1, keepdims=True)
        m_s[:, h:h + 1] = m_new
        acc_s[:, lo:hi] = alpha * acc_s[:, lo:hi] + lax.dot_general(
            p.astype(cdt), v_h, dimension_numbers=(((1,), (0,)), ((), ())),
            preferred_element_type=jnp.float32)

    @pl.when(ki == pl.num_programs(2) - 1)
    def _finalize():
        inv_l = pl.reciprocal(l_s[...], approx=approx_recip)     # (tq, H)
        for h in range(num_heads):
            lo = h * head_dim
            hi = lo + head_dim
            acc_s[:, lo:hi] = acc_s[:, lo:hi] * inv_l[:, h:h + 1]
        # Head merge + output projection as ONE K = d_model matmul.
        attn = lax.dot_general(acc_s[...].astype(cdt), wo_ref[...],
                               dimension_numbers=(((1,), (0,)), ((), ())),
                               preferred_element_type=jnp.float32) + bo_ref[...]
        # Residual + LayerNorm1 (dropout is identity in eval mode).
        r = xq_ref[0].astype(jnp.float32) + attn
        mu = jnp.mean(r, axis=-1, keepdims=True)
        var = jnp.mean(jnp.square(r - mu), axis=-1, keepdims=True)
        o_ref[0] = ((r - mu) * lax.rsqrt(var + eps) * g_ref[...]
                    + beta_ref[...]).astype(o_ref.dtype)


def _ffn_block_kernel(y_ref, w1_ref, b1_ref, w2_ref, b2_ref, g_ref, beta_ref,
                      o_ref, *, eps):
    """Row tile: Linear -> ReLU -> Linear -> residual add -> LayerNorm2."""
    cdt = y_ref.dtype
    y = y_ref[...]                                                  # (tm, D)
    h1 = lax.dot_general(y, w1_ref[...],
                         dimension_numbers=(((1,), (0,)), ((), ())),
                         preferred_element_type=jnp.float32) + b1_ref[...]
    h1 = jnp.maximum(h1, 0.0).astype(cdt)
    h2 = lax.dot_general(h1, w2_ref[...],
                         dimension_numbers=(((1,), (0,)), ((), ())),
                         preferred_element_type=jnp.float32) + b2_ref[...]
    r = y.astype(jnp.float32) + h2
    mu = jnp.mean(r, axis=-1, keepdims=True)
    var = jnp.mean(jnp.square(r - mu), axis=-1, keepdims=True)
    o_ref[...] = ((r - mu) * lax.rsqrt(var + eps) * g_ref[...]
                  + beta_ref[...]).astype(o_ref.dtype)


# ------------------------------ pallas_call wrappers ------------------------ #

def kv_proj_call(x, p, compute_dtype):
    B, S, D = x.shape
    M = B * S
    tm = M if M <= 256 else 256
    wb = 2 if compute_dtype == jnp.bfloat16 else 4
    vmem = _vmem_limit(2 * D * D * wb,               # Wkv^T (resident)
                       2 * tm * D * wb,              # input tile (double-buffered)
                       2 * tm * 2 * D * wb,          # output tile
                       tm * 2 * D * 4, 2 * D * 4)
    cost = pl.CostEstimate(flops=4 * M * D * D, transcendentals=0,
                           bytes_accessed=3 * M * D * wb + 2 * D * D * wb)
    out = pl.pallas_call(
        _kv_proj_kernel,
        out_shape=jax.ShapeDtypeStruct((M, 2 * D), compute_dtype),
        grid=(pl.cdiv(M, tm),),
        in_specs=[
            pl.BlockSpec((tm, D), lambda i: (i, 0)),
            _resident_spec((D, 2 * D), lambda i: (0, 0)),   # [Wk^T | Wv^T]
            _resident_spec((1, 2 * D), lambda i: (0, 0)),   # [bk | bv]
        ],
        out_specs=pl.BlockSpec((tm, 2 * D), lambda i: (i, 0)),
        compiler_params=pltpu.CompilerParams(
            dimension_semantics=("parallel",), vmem_limit_bytes=vmem),
        cost_estimate=cost,
    )(x.reshape(M, D), p["wkv_t"], p["bkv"])
    return out.reshape(B, S, 2 * D)


def mha_block_call(x, kv, bias, p, num_heads, compute_dtype):
    B, S, D = x.shape
    head_dim = D // num_heads
    tq = _seq_tile(S)
    tkv = _seq_tile(S)
    nq, nkv = S // tq, S // tkv
    wb = 2 if compute_dtype == jnp.bfloat16 else 4

    kernel = functools.partial(
        _mha_flash_kernel, num_heads=num_heads, head_dim=head_dim,
        eps=1e-5, approx_recip=(compute_dtype == jnp.bfloat16))

    flops = (2 * B * S * D * D                        # Q projection
             + 4 * B * num_heads * S * S * head_dim   # QK^T and PV
             + 2 * B * S * D * D)                     # output projection
    cost = pl.CostEstimate(
        flops=flops,
        transcendentals=B * num_heads * S * S + B * S,
        bytes_accessed=(2 * B * S * D * wb            # xq in + out
                        + B * S * 2 * D * wb * nq     # kv read per q tile
                        + 2 * D * D * wb + B * S * 4))

    vmem = _vmem_limit(
        2 * D * D * wb,                    # Wq^T, Wo^T (resident, single buffer)
        2 * tq * D * wb,                   # xq tile (double-buffered)
        2 * tkv * 2 * D * wb,              # kv tile (double-buffered)
        2 * tq * D * wb,                   # output tile
        tq * D * wb + tq * D * 4,          # q_s + acc_s scratch
        2 * tq * num_heads * 4,            # m_s, l_s scratch
        4 * tq * tkv * 4,                  # fp32 per-head score temporaries
        8 * D * 4)                         # biases + LN params

    return pl.pallas_call(
        kernel,
        out_shape=jax.ShapeDtypeStruct((B, S, D), compute_dtype),
        grid=(B, nq, nkv),
        in_specs=[
            pl.BlockSpec((1, tq, D), lambda b, qi, ki: (b, qi, 0)),       # x (q rows + residual)
            pl.BlockSpec((1, tkv, 2 * D), lambda b, qi, ki: (b, ki, 0)),  # K || V
            pl.BlockSpec((1, 1, tkv), lambda b, qi, ki: (b, 0, ki)),      # additive mask bias
            _resident_spec((D, D), lambda b, qi, ki: (0, 0)),             # Wq^T (scale folded)
            _resident_spec((1, D), lambda b, qi, ki: (0, 0)),             # bq (scaled)
            _resident_spec((D, D), lambda b, qi, ki: (0, 0)),             # Wo^T
            _resident_spec((1, D), lambda b, qi, ki: (0, 0)),             # bo
            _resident_spec((1, D), lambda b, qi, ki: (0, 0)),             # gamma1
            _resident_spec((1, D), lambda b, qi, ki: (0, 0)),             # beta1
        ],
        out_specs=pl.BlockSpec((1, tq, D), lambda b, qi, ki: (b, qi, 0)),
        scratch_shapes=[
            pltpu.VMEM((tq, D), compute_dtype),         # q_s
            pltpu.VMEM((tq, num_heads), jnp.float32),   # m_s
            pltpu.VMEM((tq, num_heads), jnp.float32),   # l_s
            pltpu.VMEM((tq, D), jnp.float32),           # acc_s (per-head ctx)
        ],
        compiler_params=pltpu.CompilerParams(
            dimension_semantics=("parallel", "parallel", "arbitrary"),
            vmem_limit_bytes=vmem),
        cost_estimate=cost,
    )(x.astype(compute_dtype), kv, bias, p["wq_t"], p["bq"], p["wo_t"],
      p["bo"], p["g1"], p["be1"])


def ffn_block_call(y, p, compute_dtype):
    B, S, D = y.shape
    F = p["w1_t"].shape[1]
    M = B * S
    tm = M if M <= 256 else 256
    wb = 2 if compute_dtype == jnp.bfloat16 else 4
    vmem = _vmem_limit(2 * D * F * wb,               # W1^T + W2^T (resident)
                       4 * tm * D * wb,              # in/out tiles (double-buffered)
                       tm * F * 4,                   # fp32 hidden activations
                       (F + 3 * D) * 4)
    cost = pl.CostEstimate(flops=4 * M * D * F, transcendentals=M,
                           bytes_accessed=2 * M * D * wb + 2 * D * F * wb)
    out = pl.pallas_call(
        functools.partial(_ffn_block_kernel, eps=1e-5),
        out_shape=jax.ShapeDtypeStruct((M, D), compute_dtype),
        grid=(pl.cdiv(M, tm),),
        in_specs=[
            pl.BlockSpec((tm, D), lambda i: (i, 0)),        # norm1 output rows
            _resident_spec((D, F), lambda i: (0, 0)),       # W1^T
            _resident_spec((1, F), lambda i: (0, 0)),       # b1
            _resident_spec((F, D), lambda i: (0, 0)),       # W2^T
            _resident_spec((1, D), lambda i: (0, 0)),       # b2
            _resident_spec((1, D), lambda i: (0, 0)),       # gamma2
            _resident_spec((1, D), lambda i: (0, 0)),       # beta2
        ],
        out_specs=pl.BlockSpec((tm, D), lambda i: (i, 0)),
        compiler_params=pltpu.CompilerParams(
            dimension_semantics=("parallel",), vmem_limit_bytes=vmem),
        cost_estimate=cost,
    )(y.reshape(M, D), p["w1_t"], p["b1"], p["w2_t"], p["b2"], p["g2"], p["be2"])
    return out.reshape(B, S, D)


# --------------------------- parameter handling ----------------------------- #

def init_params(key, d_model, d_ff):
    """nn.Linear-style init (U(-1/sqrt(fan_in), 1/sqrt(fan_in)))."""
    ks = jax.random.split(key, 16)

    def lin(kw, kb, out_f, in_f):
        bound = 1.0 / math.sqrt(in_f)
        w = jax.random.uniform(kw, (out_f, in_f), jnp.float32, -bound, bound)
        b = jax.random.uniform(kb, (out_f,), jnp.float32, -bound, bound)
        return w, b

    wq, bq = lin(ks[0], ks[1], d_model, d_model)
    wk, bk = lin(ks[2], ks[3], d_model, d_model)
    wv, bv = lin(ks[4], ks[5], d_model, d_model)
    wo, bo = lin(ks[6], ks[7], d_model, d_model)
    w1, b1 = lin(ks[8], ks[9], d_ff, d_model)
    w2, b2 = lin(ks[10], ks[11], d_model, d_ff)
    g1 = 1.0 + 0.1 * jax.random.normal(ks[12], (d_model,), jnp.float32)
    be1 = 0.1 * jax.random.normal(ks[13], (d_model,), jnp.float32)
    g2 = 1.0 + 0.1 * jax.random.normal(ks[14], (d_model,), jnp.float32)
    be2 = 0.1 * jax.random.normal(ks[15], (d_model,), jnp.float32)
    return dict(wq=wq, bq=bq, wk=wk, bk=bk, wv=wv, bv=bv, wo=wo, bo=bo,
                w1=w1, b1=b1, w2=w2, b2=b2, g1=g1, be1=be1, g2=g2, be2=be2)


def pack_params(params, num_heads, compute_dtype):
    """One-time weight packing (call once, NOT per forward):
       - pre-transpose to (in, out) layout so kernels never transpose,
       - fuse K/V weights into a (D, 2D) slab,
       - fold 1/sqrt(head_dim) into Wq / bq."""
    d_model = params["wq"].shape[0]
    scale = 1.0 / math.sqrt(d_model // num_heads)
    as_c = lambda w: w.T.astype(compute_dtype)
    row = lambda v: v.reshape(1, -1).astype(jnp.float32)
    wkv = jnp.concatenate([params["wk"], params["wv"]], axis=0)   # (2D, D)
    bkv = jnp.concatenate([params["bk"], params["bv"]], axis=0)
    return {
        "wq_t": as_c(params["wq"] * scale),   # (D, D), scale folded
        "bq": row(params["bq"] * scale),
        "wkv_t": as_c(wkv),                   # (D, 2D) = [Wk^T | Wv^T]
        "bkv": row(bkv),
        "wo_t": as_c(params["wo"]),           # (D, D)
        "bo": row(params["bo"]),
        "g1": row(params["g1"]), "be1": row(params["be1"]),
        "w1_t": as_c(params["w1"]),           # (D, F)
        "b1": row(params["b1"]),
        "w2_t": as_c(params["w2"]),           # (F, D)
        "b2": row(params["b2"]),
        "g2": row(params["g2"]), "be2": row(params["be2"]),
    }


def encoder_layer_forward(packed, x, src_mask=None, *, num_heads,
                          compute_dtype=jnp.bfloat16):
    """EncoderLayer forward (eval mode: dropout = identity). `packed` comes
    from pack_params() and is reused across calls."""
    B, S, _ = x.shape
    # Additive attention-mask bias, built once outside the kernels:
    # 0 where attended, -1e9 where mask == 0 (matches masked_fill(mask==0, -1e9)).
    if src_mask is None:
        bias = jnp.zeros((B, 1, S), jnp.float32)
    else:
        bias = jnp.where(src_mask.reshape(B, 1, S) == 0,
                         jnp.float32(-1e9), jnp.float32(0.0))
    xc = x.astype(compute_dtype)
    kv = kv_proj_call(xc, packed, compute_dtype)                    # K || V
    y1 = mha_block_call(xc, kv, bias, packed, num_heads, compute_dtype)
    return ffn_block_call(y1, packed, compute_dtype)


# ------------------------------ pure-JAX reference -------------------------- #

def reference_forward(params, x, src_mask, num_heads):
    B, S, D = x.shape
    hd = D // num_heads

    def linear(z, w, b):
        return z @ w.T + b

    def layernorm(z, g, b, eps=1e-5):
        mu = jnp.mean(z, axis=-1, keepdims=True)
        var = jnp.mean(jnp.square(z - mu), axis=-1, keepdims=True)
        return (z - mu) / jnp.sqrt(var + eps) * g + b

    Q = linear(x, params["wq"], params["bq"]).reshape(B, S, num_heads, hd).transpose(0, 2, 1, 3)
    K = linear(x, params["wk"], params["bk"]).reshape(B, S, num_heads, hd).transpose(0, 2, 1, 3)
    V = linear(x, params["wv"], params["bv"]).reshape(B, S, num_heads, hd).transpose(0, 2, 1, 3)
    scores = jnp.einsum("bhqd,bhkd->bhqk", Q, K) / math.sqrt(hd)
    if src_mask is not None:
        m = src_mask.reshape(B, 1, 1, S)
        scores = jnp.where(m == 0, -1000000000.0, scores)
    probs = jax.nn.softmax(scores, axis=-1)
    ctx = jnp.einsum("bhqk,bhkd->bhqd", probs, V).transpose(0, 2, 1, 3).reshape(B, S, D)
    attn = linear(ctx, params["wo"], params["bo"])
    h = layernorm(x + attn, params["g1"], params["be1"])
    ff = jnp.maximum(h @ params["w1"].T + params["b1"], 0.0) @ params["w2"].T + params["b2"]
    return layernorm(h + ff, params["g2"], params["be2"])


# ----------------------------------- main ----------------------------------- #

if __name__ == "__main__":
    d_model, num_heads, d_ff = 32, 4, 64
    batch, seq = 2, 8

    root = jax.random.PRNGKey(0)
    k_params, k_x = jax.random.split(root)
    params = init_params(k_params, d_model, d_ff)
    x = jax.random.normal(k_x, (batch, seq, d_model), jnp.float32)
    # 2D padding mask (batch, seq): last 3 key positions of batch 1 masked out.
    src_mask = jnp.ones((batch, seq), jnp.float32).at[1, -3:].set(0.0)

    ref = reference_forward(params, x, src_mask, num_heads)

    # One-time weight packing (hoisted out of the forward).
    packed_f32 = pack_params(params, num_heads, jnp.float32)
    packed_bf16 = pack_params(params, num_heads, jnp.bfloat16)

    # fp32 path: tight correctness check (with a one-shot fallback to
    # double-buffered weight specs if pipeline_mode is unsupported).
    try:
        out_f32 = jax.block_until_ready(encoder_layer_forward(
            packed_f32, x, src_mask, num_heads=num_heads,
            compute_dtype=jnp.float32))
    except Exception:
        _CFG["single_buffer_weights"] = False
        out_f32 = jax.block_until_ready(encoder_layer_forward(
            packed_f32, x, src_mask, num_heads=num_heads,
            compute_dtype=jnp.float32))
    assert out_f32.shape == (batch, seq, d_model)
    assert jnp.allclose(out_f32, ref, atol=2e-3, rtol=2e-3), (
        "fp32 mismatch, max abs err = %s" % jnp.max(jnp.abs(out_f32 - ref)))

    # bf16 production path (fp32 MXU accumulation): loose check — bf16 inputs
    # carry ~0.4% relative rounding, a few % end-to-end after several matmuls.
    out_bf16 = jax.block_until_ready(encoder_layer_forward(
        packed_bf16, x, src_mask, num_heads=num_heads,
        compute_dtype=jnp.bfloat16))
    assert jnp.allclose(out_bf16.astype(jnp.float32), ref, atol=8e-2, rtol=8e-2), (
        "bf16 mismatch, max abs err = %s"
        % jnp.max(jnp.abs(out_bf16.astype(jnp.float32) - ref)))

    # mask=None path.
    ref_nm = reference_forward(params, x, None, num_heads)
    out_nm = jax.block_until_ready(encoder_layer_forward(
        packed_f32, x, None, num_heads=num_heads, compute_dtype=jnp.float32))
    assert jnp.allclose(out_nm, ref_nm, atol=2e-3, rtol=2e-3), "no-mask mismatch"

    print("KERNEL_OK")
</pallas_src>

<mosaic_0001>
module attributes {stable_mosaic.version = 11 : i64} {
  func.func @_kv_proj_kernel(%arg0: i32, %arg1: memref<16x32xf32, #tpu.memory_space<vmem>>, %arg2: memref<32x64xf32, #tpu.memory_space<vmem>>, %arg3: memref<1x64xf32, #tpu.memory_space<vmem>>, %arg4: memref<16x64xf32, #tpu.memory_space<vmem>>) attributes {dimension_semantics = [#tpu.dimension_semantics<parallel>], iteration_bounds = array<i64: 1>, scalar_prefetch = 0 : i64, scratch_operands = 0 : i64, tpu.core_type = #tpu.core_type<tc>, window_params = [{transform_indices = @transform_0, window_bounds = array<i64: 16, 32>}, {pipeline_mode = #tpu.pipeline_mode<synchronous>, transform_indices = @transform_1, window_bounds = array<i64: 32, 64>}, {pipeline_mode = #tpu.pipeline_mode<synchronous>, transform_indices = @transform_2, window_bounds = array<i64: 1, 64>}, {transform_indices = @transform_3, window_bounds = array<i64: 16, 64>}]} {
    %c0 = arith.constant 0 : index
    %c0_0 = arith.constant 0 : index
    %0 = vector.load %arg1[%c0, %c0_0] : memref<16x32xf32, #tpu.memory_space<vmem>>, vector<16x32xf32>
    %c0_1 = arith.constant 0 : index
    %c0_2 = arith.constant 0 : index
    %1 = vector.load %arg2[%c0_1, %c0_2] : memref<32x64xf32, #tpu.memory_space<vmem>>, vector<32x64xf32>
    %cst = arith.constant dense<0.000000e+00> : vector<16x64xf32>
    %2 = tpu.matmul %0, %1, %cst {dimension_numbers = #tpu.dot_dimension_numbers<[1], [0], [0], [1], [0, 0, 1, 1], [], []>} : vector<16x32xf32>, vector<32x64xf32>, vector<16x64xf32> -> vector<16x64xf32>
    %c0_3 = arith.constant 0 : index
    %c0_4 = arith.constant 0 : index
    %3 = vector.load %arg3[%c0_3, %c0_4] : memref<1x64xf32, #tpu.memory_space<vmem>>, vector<1x64xf32>
    %4 = vector.broadcast %3 : vector<1x64xf32> to vector<16x64xf32>
    %5 = arith.addf %2, %4 : vector<16x64xf32>
    %c0_5 = arith.constant 0 : index
    %c0_6 = arith.constant 0 : index
    %6 = vector.load %arg4[%c0_5, %c0_6] : memref<16x64xf32, #tpu.memory_space<vmem>>, vector<16x64xf32>
    tpu.vector_store %arg4[%c0_5, %c0_6], %5 {strides = array<i32>} : memref<16x64xf32, #tpu.memory_space<vmem>>, vector<16x64xf32>,
    return
  }
  func.func @transform_0(%arg0: i32) -> (i32, i32) {
    %c0_i32 = arith.constant 0 : i32
    %c0_i32_0 = arith.constant 0 : i32
    return %arg0, %c0_i32 : i32, i32
  }
  func.func @transform_1(%arg0: i32) -> (i32, i32) {
    %c0_i32 = arith.constant 0 : i32
    %c0_i32_0 = arith.constant 0 : i32
    %c0_i32_1 = arith.constant 0 : i32
    return %c0_i32, %c0_i32_0 : i32, i32
  }
  func.func @transform_2(%arg0: i32) -> (i32, i32) {
    %c0_i32 = arith.constant 0 : i32
    %c0_i32_0 = arith.constant 0 : i32
    %c0_i32_1 = arith.constant 0 : i32
    return %c0_i32, %c0_i32_0 : i32, i32
  }
  func.func @transform_3(%arg0: i32) -> (i32, i32) {
    %c0_i32 = arith.constant 0 : i32
    %c0_i32_0 = arith.constant 0 : i32
    return %arg0, %c0_i32 : i32, i32
  }
}

module attributes {stable_mosaic.version = 11 : i64} {
  func.func @_kv_proj_kernel(%arg0: i32, %arg1: memref<16x32xf32, #tpu.memory_space<vmem>>, %arg2: memref<32x64xf32, #tpu.memory_space<vmem>>, %arg3: memref<1x64xf32, #tpu.memory_space<vmem>>, %arg4: memref<16x64xf32, #tpu.memory_space<vmem>>) attributes {dimension_semantics = [#tpu.dimension_semantics<parallel>], iteration_bounds = array<i64: 1>, scalar_prefetch = 0 : i64, scratch_operands = 0 : i64, tpu.core_type = #tpu.core_type<tc>, window_params = [{transform_indices = @transform_0, window_bounds = array<i64: 16, 32>}, {pipeline_mode = #tpu.pipeline_mode<synchronous>, transform_indices = @transform_1, window_bounds = array<i64: 32, 64>}, {pipeline_mode = #tpu.pipeline_mode<synchronous>, transform_indices = @transform_2, window_bounds = array<i64: 1, 64>}, {transform_indices = @transform_3, window_bounds = array<i64: 16, 64>}]} {
    %c0 = arith.constant 0 : index
    %c0_0 = arith.constant 0 : index
    %0 = vector.load %arg1[%c0, %c0_0] : memref<16x32xf32, #tpu.memory_space<vmem>>, vector<16x32xf32>
    %c0_1 = arith.constant 0 : index
    %c0_2 = arith.constant 0 : index
    %1 = vector.load %arg2[%c0_1, %c0_2] : memref<32x64xf32, #tpu.memory_space<vmem>>, vector<32x64xf32>
    %cst = arith.constant dense<0.000000e+00> : vector<16x64xf32>
    %2 = tpu.matmul %0, %1, %cst {dimension_numbers = #tpu.dot_dimension_numbers<[1], [0], [0], [1], [0, 0, 1, 1], [], []>} : vector<16x32xf32>, vector<32x64xf32>, vector<16x64xf32> -> vector<16x64xf32>
    %c0_3 = arith.constant 0 : index
    %c0_4 = arith.constant 0 : index
    %3 = vector.load %arg3[%c0_3, %c0_4] : memref<1x64xf32, #tpu.memory_space<vmem>>, vector<1x64xf32>
    %4 = vector.broadcast %3 : vector<1x64xf32> to vector<16x64xf32>
    %5 = arith.addf %2, %4 : vector<16x64xf32>
    %c0_5 = arith.constant 0 : index
    %c0_6 = arith.constant 0 : index
    %6 = vector.load %arg4[%c0_5, %c0_6] : memref<16x64xf32, #tpu.memory_space<vmem>>, vector<16x64xf32>
    tpu.vector_store %arg4[%c0_5, %c0_6], %5 {strides = array<i32>} : memref<16x64xf32, #tpu.memory_space<vmem>>, vector<16x64xf32>,
    return
  }
  func.func @transform_0(%arg0: i32) -> (i32, i32) {
    %c0_i32 = arith.constant 0 : i32
    %c0_i32_0 = arith.constant 0 : i32
    return %arg0, %c0_i32 : i32, i32
  }
  func.func @transform_1(%arg0: i32) -> (i32, i32) {
    %c0_i32 = arith.constant 0 : i32
    %c0_i32_0 = arith.constant 0 : i32
    %c0_i32_1 = arith.constant 0 : i32
    return %c0_i32, %c0_i32_0 : i32, i32
  }
  func.func @transform_2(%arg0: i32) -> (i32, i32) {
    %c0_i32 = arith.constant 0 : i32
    %c0_i32_0 = arith.constant 0 : i32
    %c0_i32_1 = arith.constant 0 : i32
    return %c0_i32, %c0_i32_0 : i32, i32
  }
  func.func @transform_3(%arg0: i32) -> (i32, i32) {
    %c0_i32 = arith.constant 0 : i32
    %c0_i32_0 = arith.constant 0 : i32
    return %arg0, %c0_i32 : i32, i32
  }
}

</mosaic_0001>

<llo_original>
// kernel: tpu_custom_call.1
$region0: #{tpu_custom_call.1}
  #allocation0 [shape = 'u32[]', space=smem, size = 0x4, offset = 0x4, fixed_abs, tag = 'smem constant byte address 0x4 - core index']
  #allocation1 [shape = 'u32[72,128]{1,0:T(1,128)}', space=vmem, size = 0x9000, scoped, tag = 'internal scratch']
  %s0 = inlined_call_operand.hbm [shape: f32[16,32], index: 0, kind: input, shape index: {}]
  %s1 = inlined_call_operand.hbm [shape: f32[32,64], index: 1, kind: input, shape index: {}]
  %s2 = inlined_call_operand.vmem [shape: f32[1,64], index: 2, kind: input, shape index: {}]
  %s3 = inlined_call_operand.hbm [shape: f32[16,64], index: 3, kind: output, shape index: {}]
  %s4 = sld [smem:[#allocation0]]
  $region30: #{tpu_custom_call.1} parent=0
    _
  %s6 = ssub.s32 1, %s4
  %s7 = scalar_select 0, %s6, %s4
  $region1: #{tpu_custom_call.1} parent=0
    #allocation2 [shape = 'u8[8192]{0}', space=vmem, size = 0x2000, scoped, tag = 'input window, operand 0, single buffered']
    #allocation3 [shape = 's32[1]{0}', space=sflag, size = 0x4, scoped, tag = 'scoped memory for tpu_custom_call.1']
    #allocation4 [shape = 's32[1]{0}', space=sflag, size = 0x4, scoped, tag = 'scoped memory for tpu_custom_call.1']
    #allocation5 [shape = 'u8[16384]{0}', space=vmem, size = 0x4000, scoped, tag = 'input window, operand 1, single buffered']
    #allocation6 [shape = 's32[1]{0}', space=sflag, size = 0x4, scoped, tag = 'scoped memory for tpu_custom_call.1']
    #allocation7 [shape = 'u8[8192]{0}', space=vmem, size = 0x2000, scoped, tag = 'output window, operand 0, single buffered']
    %8 = vsyncpa [#allocation3], 0
    %9 = vsyncpa [#allocation6], 0
    %10 = vsyncpa [#allocation4], 0
    // Predicated region
    $region2: #{tpu_custom_call.1} parent=1 // pred_check
      _
    $region3: #{tpu_custom_call.1} parent=1 // pred_check_branch
      %12 = sbr.rel (0) target = $region5
    $region4: #{tpu_custom_call.1} parent=1 // pred_region
      %14 = vsyncadd [#allocation3], 0
      %s15 = sshll.u32 %s0, 4
      %s16 = int_to_ptr.hbm [resolvable:$true] %s15
      %s17 = sshll.u32 [#allocation2], 4
      %s18 = int_to_ptr.vmem [resolvable:$true] %s17
      %23 = dma.hbm_to_vmem [thread:$0]  %s16, 256, %s18, [#allocation3], 128, 128, 8
    $region5: #{tpu_custom_call.1} parent=1 // pred_fallthru
      _
    // Predicated region
    $region6: #{tpu_custom_call.1} parent=1 // pred_check
      _
    $region7: #{tpu_custom_call.1} parent=1 // pred_check_branch
      %25 = sbr.rel (0) target = $region9
    $region8: #{tpu_custom_call.1} parent=1 // pred_region
      %27 = vsyncadd [#allocation6], 0
      %s28 = sshll.u32 %s1, 4
      %s29 = int_to_ptr.hbm [resolvable:$true] %s28
      %s30 = sshll.u32 [#allocation5], 4
      %s31 = int_to_ptr.vmem [resolvable:$true] %s30
      %36 = dma.hbm_to_vmem [thread:$0]  %s29, 512, %s31, [#allocation6], 128, 128, 8
    $region9: #{tpu_custom_call.1} parent=1 // pred_fallthru
      _
    // Predicated region
    $region10: #{tpu_custom_call.1} parent=1 // pred_check
      _
    $region11: #{tpu_custom_call.1} parent=1 // pred_check_branch
      %38 = sbr.rel (0) target = $region13
    $region12: #{tpu_custom_call.1} parent=1 // pred_region
      _
    $region13: #{tpu_custom_call.1} parent=1 // pred_fallthru
      _
    // Predicated region
    $region14: #{tpu_custom_call.1} parent=1 // pred_check
      _
    $region15: #{tpu_custom_call.1} parent=1 // pred_check_branch
      %40 = sbr.rel (0) target = $region17
    $region16: #{tpu_custom_call.1} parent=1 // pred_region
      %42 = dma.done [#allocation3], 256
    $region17: #{tpu_custom_call.1} parent=1 // pred_fallthru
      _
    // Predicated region
    $region18: #{tpu_custom_call.1} parent=1 // pred_check
      _
    $region19: #{tpu_custom_call.1} parent=1 // pred_check_branch
      %44 = sbr.rel (0) target = $region21
    $region20: #{tpu_custom_call.1} parent=1 // pred_region
      %46 = dma.done [#allocation6], 512
    $region21: #{tpu_custom_call.1} parent=1 // pred_fallthru
      _
    %v47 = vld [vmem:[#allocation2] sm:$0xff]
    %v48 = vld [vmem:[#allocation2 + $0x8] sm:$0xff]
    %v49 = vld [vmem:[#allocation5] sm:$0xff]
    %v50 = vld [vmem:[#allocation5 + $0x8] sm:$0xff]
    %v51 = vld [vmem:[#allocation5 + $0x10] sm:$0xff]
    %v52 = vld [vmem:[#allocation5 + $0x18] sm:$0xff]
    %v53 = vld [vmem:[%s2] sm:$0x1]
    %v55 = vperm.slane %v53, 0
    %vm57 = vcmask 261120
    %v59 = vsel %vm57, %v47, 0
    %v62 = vsel %vm57, %v48, 0
    %64 = vmatpush.msra.mxu0 0.0
    %65 = vmatpush.msra.mxu0 0.0
    %66 = vmatpush.msra.mxu0 0.0
    %67 = vmatpush.msra.mxu0 0.0
    %68 = vmatpush.msra.mxu0 0.0
    %69 = vmatpush.msra.mxu0 0.0
    %70 = vmatpush.msra.mxu0 0.0
    %71 = vmatpush.msra.mxu0 0.0
    %72 = vmatpush.msra.mxu0 0.0
    %73 = vmatpush.msra.mxu0 0.0
    %74 = vmatpush.msra.mxu0 0.0
    %75 = vmatpush.msra.mxu0 0.0
    %76 = vmatpush.msra.mxu0 %v52
    %77 = vmatpush.msra.mxu0 %v51
    %78 = vmatpush.msra.mxu0 %v50
    %79 = vmatpush.msra.mxu0 %v49
    %80 = vmatmul.f32.gmra.mxu0 %v59
    %v81 = vpop.f32.mrf.mxu0
    %v82 = vadd.f32 %v55, %v81
    %83 = vmatmul.f32.gmra.mxu0 %v62
    %v84 = vpop.f32.mrf.mxu0
    %v85 = vadd.f32 %v55, %v84
    %86 = vdwg.mxu0
    %vm87 = vcmask 523264
    %88 = vst.msk [vmem:[#allocation7] sm:$0xff] %vm87, %v82
    %89 = vst.msk [vmem:[#allocation7 + $0x8] sm:$0xff] %vm87, %v85
    // Predicated region
    $region22: #{tpu_custom_call.1} parent=1 // pred_check
      _
    $region23: #{tpu_custom_call.1} parent=1 // pred_check_branch
      %91 = sbr.rel (0) target = $region25
    $region24: #{tpu_custom_call.1} parent=1 // pred_region
      %93 = vsyncadd [#allocation4], 0
      %s94 = sshll.u32 [#allocation7], 4
      %s95 = int_to_ptr.vmem [resolvable:$true] %s94
      %s96 = sshll.u32 %s3, 4
      %s97 = int_to_ptr.hbm [resolvable:$true] %s96
      %102 = dma.vmem_to_hbm [thread:$0]  %s95, 256, %s97, [#allocation4], 128, 128, 8
    $region25: #{tpu_custom_call.1} parent=1 // pred_fallthru
      _
    // Predicated region
    $region26: #{tpu_custom_call.1} parent=1 // pred_check
      _
    $region27: #{tpu_custom_call.1} parent=1 // pred_check_branch
      %104 = sbr.rel (0) target = $region29
    $region28: #{tpu_custom_call.1} parent=1 // pred_region
      %106 = dma.done [#allocation4], 256
    $region29: #{tpu_custom_call.1} parent=1 // pred_fallthru
      _
    %107 = vsyncpa [#allocation3], 1
    %108 = vsyncpa [#allocation6], 1
    %109 = vsyncpa [#allocation4], 1

// kernel: tpu_custom_call.1
$region0: #{tpu_custom_call.1}
  #allocation0 [shape = 'u32[]', space=smem, size = 0x4, offset = 0x4, fixed_abs, tag = 'smem constant byte address 0x4 - core index']
  #allocation1 [shape = 'u32[72,128]{1,0:T(1,128)}', space=vmem, size = 0x9000, scoped, tag = 'internal scratch']
  %s0 = inlined_call_operand.hbm [shape: f32[16,32], index: 0, kind: input, shape index: {}]
  %s1 = inlined_call_operand.hbm [shape: f32[32,64], index: 1, kind: input, shape index: {}]
  %s2 = inlined_call_operand.vmem [shape: f32[1,64], index: 2, kind: input, shape index: {}]
  %s3 = inlined_call_operand.hbm [shape: f32[16,64], index: 3, kind: output, shape index: {}]
  %s4 = sld [smem:[#allocation0]]
  $region30: #{tpu_custom_call.1} parent=0
    _
  %s6 = ssub.s32 1, %s4
  %s7 = scalar_select 0, %s6, %s4
  $region1: #{tpu_custom_call.1} parent=0
    #allocation2 [shape = 'u8[8192]{0}', space=vmem, size = 0x2000, scoped, tag = 'input window, operand 0, single buffered']
    #allocation3 [shape = 's32[1]{0}', space=sflag, size = 0x4, scoped, tag = 'scoped memory for tpu_custom_call.1']
    #allocation4 [shape = 's32[1]{0}', space=sflag, size = 0x4, scoped, tag = 'scoped memory for tpu_custom_call.1']
    #allocation5 [shape = 'u8[16384]{0}', space=vmem, size = 0x4000, scoped, tag = 'input window, operand 1, single buffered']
    #allocation6 [shape = 's32[1]{0}', space=sflag, size = 0x4, scoped, tag = 'scoped memory for tpu_custom_call.1']
    #allocation7 [shape = 'u8[8192]{0}', space=vmem, size = 0x2000, scoped, tag = 'output window, operand 0, single buffered']
    %8 = vsyncpa [#allocation3], 0
    %9 = vsyncpa [#allocation6], 0
    %10 = vsyncpa [#allocation4], 0
    // Predicated region
    $region2: #{tpu_custom_call.1} parent=1 // pred_check
      _
    $region3: #{tpu_custom_call.1} parent=1 // pred_check_branch
      %12 = sbr.rel (0) target = $region5
    $region4: #{tpu_custom_call.1} parent=1 // pred_region
      %14 = vsyncadd [#allocation3], 0
      %s15 = sshll.u32 %s0, 4
      %s16 = int_to_ptr.hbm [resolvable:$true] %s15
      %s17 = sshll.u32 [#allocation2], 4
      %s18 = int_to_ptr.vmem [resolvable:$true] %s17
      %23 = dma.hbm_to_vmem [thread:$0]  %s16, 256, %s18, [#allocation3], 128, 128, 8
    $region5: #{tpu_custom_call.1} parent=1 // pred_fallthru
      _
    // Predicated region
    $region6: #{tpu_custom_call.1} parent=1 // pred_check
      _
    $region7: #{tpu_custom_call.1} parent=1 // pred_check_branch
      %25 = sbr.rel (0) target = $region9
    $region8: #{tpu_custom_call.1} parent=1 // pred_region
      %27 = vsyncadd [#allocation6], 0
      %s28 = sshll.u32 %s1, 4
      %s29 = int_to_ptr.hbm [resolvable:$true] %s28
      %s30 = sshll.u32 [#allocation5], 4
      %s31 = int_to_ptr.vmem [resolvable:$true] %s30
      %36 = dma.hbm_to_vmem [thread:$0]  %s29, 512, %s31, [#allocation6], 128, 128, 8
    $region9: #{tpu_custom_call.1} parent=1 // pred_fallthru
      _
    // Predicated region
    $region10: #{tpu_custom_call.1} parent=1 // pred_check
      _
    $region11: #{tpu_custom_call.1} parent=1 // pred_check_branch
      %38 = sbr.rel (0) target = $region13
    $region12: #{tpu_custom_call.1} parent=1 // pred_region
      _
    $region13: #{tpu_custom_call.1} parent=1 // pred_fallthru
      _
    // Predicated region
    $region14: #{tpu_custom_call.1} parent=1 // pred_check
      _
    $region15: #{tpu_custom_call.1} parent=1 // pred_check_branch
      %40 = sbr.rel (0) target = $region17
    $region16: #{tpu_custom_call.1} parent=1 // pred_region
      %42 = dma.done [#allocation3], 256
    $region17: #{tpu_custom_call.1} parent=1 // pred_fallthru
      _
    // Predicated region
    $region18: #{tpu_custom_call.1} parent=1 // pred_check
      _
    $region19: #{tpu_custom_call.1} parent=1 // pred_check_branch
      %44 = sbr.rel (0) target = $region21
    $region20: #{tpu_custom_call.1} parent=1 // pred_region
      %46 = dma.done [#allocation6], 512
    $region21: #{tpu_custom_call.1} parent=1 // pred_fallthru
      _
    %v47 = vld [vmem:[#allocation2] sm:$0xff]
    %v48 = vld [vmem:[#allocation2 + $0x8] sm:$0xff]
    %v49 = vld [vmem:[#allocation5] sm:$0xff]
    %v50 = vld [vmem:[#allocation5 + $0x8] sm:$0xff]
    %v51 = vld [vmem:[#allocation5 + $0x10] sm:$0xff]
    %v52 = vld [vmem:[#allocation5 + $0x18] sm:$0xff]
    %v53 = vld [vmem:[%s2] sm:$0x1]
    %v55 = vperm.slane %v53, 0
    %vm57 = vcmask 261120
    %v59 = vsel %vm57, %v47, 0
    %v62 = vsel %vm57, %v48, 0
    %64 = vmatpush.msra.mxu0 0.0
    %65 = vmatpush.msra.mxu0 0.0
    %66 = vmatpush.msra.mxu0 0.0
    %67 = vmatpush.msra.mxu0 0.0
    %68 = vmatpush.msra.mxu0 0.0
    %69 = vmatpush.msra.mxu0 0.0
    %70 = vmatpush.msra.mxu0 0.0
    %71 = vmatpush.msra.mxu0 0.0
    %72 = vmatpush.msra.mxu0 0.0
    %73 = vmatpush.msra.mxu0 0.0
    %74 = vmatpush.msra.mxu0 0.0
    %75 = vmatpush.msra.mxu0 0.0
    %76 = vmatpush.msra.mxu0 %v52
    %77 = vmatpush.msra.mxu0 %v51
    %78 = vmatpush.msra.mxu0 %v50
    %79 = vmatpush.msra.mxu0 %v49
    %80 = vmatmul.f32.gmra.mxu0 %v59
    %v81 = vpop.f32.mrf.mxu0
    %v82 = vadd.f32 %v55, %v81
    %83 = vmatmul.f32.gmra.mxu0 %v62
    %v84 = vpop.f32.mrf.mxu0
    %v85 = vadd.f32 %v55, %v84
    %86 = vdwg.mxu0
    %vm87 = vcmask 523264
    %88 = vst.msk [vmem:[#allocation7] sm:$0xff] %vm87, %v82
    %89 = vst.msk [vmem:[#allocation7 + $0x8] sm:$0xff] %vm87, %v85
    // Predicated region
    $region22: #{tpu_custom_call.1} parent=1 // pred_check
      _
    $region23: #{tpu_custom_call.1} parent=1 // pred_check_branch
      %91 = sbr.rel (0) target = $region25
    $region24: #{tpu_custom_call.1} parent=1 // pred_region
      %93 = vsyncadd [#allocation4], 0
      %s94 = sshll.u32 [#allocation7], 4
      %s95 = int_to_ptr.vmem [resolvable:$true] %s94
      %s96 = sshll.u32 %s3, 4
      %s97 = int_to_ptr.hbm [resolvable:$true] %s96
      %102 = dma.vmem_to_hbm [thread:$0]  %s95, 256, %s97, [#allocation4], 128, 128, 8
    $region25: #{tpu_custom_call.1} parent=1 // pred_fallthru
      _
    // Predicated region
    $region26: #{tpu_custom_call.1} parent=1 // pred_check
      _
    $region27: #{tpu_custom_call.1} parent=1 // pred_check_branch
      %104 = sbr.rel (0) target = $region29
    $region28: #{tpu_custom_call.1} parent=1 // pred_region
      %106 = dma.done [#allocation4], 256
    $region29: #{tpu_custom_call.1} parent=1 // pred_fallthru
      _
    %107 = vsyncpa [#allocation3], 1
    %108 = vsyncpa [#allocation6], 1
    %109 = vsyncpa [#allocation4], 1

</llo_original>
